<compile_context>
chip_gen: v5e
topology: v5e:2x2
jax: 0.10.0
libtpu: 0.0.40
codegen_flags: <defaults>
</compile_context>

<pallas_src>
import jax
import jax.numpy as jnp
from jax.experimental import pallas as pl
from jax.experimental.pallas import tpu as pltpu  # noqa: F401  (TPU backend)
import numpy as np


def _log_sigmoid(x):
    # numerically stable log(sigmoid(x)) = min(x,0) - log1p(exp(-|x|))
    return jnp.minimum(x, 0.0) - jnp.log1p(jnp.exp(-jnp.abs(x)))


def made_kernel(x_ref, w1_ref, w2_ref, w3_ref, b_ref, o_ref):
    """Full 3-layer MADE forward in one invocation.

    x_ref : (B, D) f32 activations
    wN_ref: (D, D) bf16, already mask-folded and transposed to (in, out)
    b_ref : (3, D) f32 biases (row n = bias of layer n+1)
    o_ref : (B, D) f32 log-sigmoid outputs
    """
    x = x_ref[...]                                              # (B, D) f32

    # Layer 1: Type-A masked linear (mask pre-folded) + ReLU
    h = jnp.dot(x.astype(jnp.bfloat16), w1_ref[...],
                preferred_element_type=jnp.float32) + b_ref[0:1, :]
    h = jnp.maximum(h, 0.0)

    # Layer 2: Type-B masked linear (mask pre-folded) + ReLU
    h = jnp.dot(h.astype(jnp.bfloat16), w2_ref[...],
                preferred_element_type=jnp.float32) + b_ref[1:2, :]
    h = jnp.maximum(h, 0.0)

    # Layer 3: Type-B masked linear, then logsigmoid
    h = jnp.dot(h.astype(jnp.bfloat16), w3_ref[...],
                preferred_element_type=jnp.float32) + b_ref[2:3, :]

    o_ref[...] = _log_sigmoid(h)


def prepare_params(params):
    """One-time host-side fold: mask-multiply, transpose to (in,out), cast bf16."""
    D = params["w1"].shape[0]
    mask_a = jnp.tril(jnp.ones((D, D), jnp.float32), k=-1)   # Type A (strict)
    mask_b = jnp.tril(jnp.ones((D, D), jnp.float32), k=0)    # Type B (incl. diag)
    fold = lambda w, m: jnp.transpose(w * m).astype(jnp.bfloat16)
    return {
        "wt1": fold(params["w1"], mask_a),
        "wt2": fold(params["w2"], mask_b),
        "wt3": fold(params["w3"], mask_b),
        "biases": jnp.stack(
            [params["b1"], params["b2"], params["b3"]], axis=0
        ).astype(jnp.float32),                                # (3, D)
    }


def simple_mnist_made_forward(x, folded):
    """x: (B, H, W) float32.  folded: output of prepare_params."""
    B = x.shape[0]
    D = folded["wt1"].shape[0]
    x2 = x.reshape(B, D)                                      # torch .view(B, D)

    full_bd = pl.BlockSpec((B, D), lambda: (0, 0))
    full_dd = pl.BlockSpec((D, D), lambda: (0, 0))
    full_3d = pl.BlockSpec((3, D), lambda: (0, 0))

    out = pl.pallas_call(
        made_kernel,
        out_shape=jax.ShapeDtypeStruct((B, D), jnp.float32),
        grid=(),
        in_specs=[full_bd, full_dd, full_dd, full_dd, full_3d],
        out_specs=full_bd,
    )(x2, folded["wt1"], folded["wt2"], folded["wt3"], folded["biases"])
    return out                                                # (B, D)


def init_params(key, D):
    """Deterministic init mimicking nn.Linear(D, D) default U(-1/sqrt(D), 1/sqrt(D))."""
    ks = jax.random.split(key, 6)
    bound = 1.0 / np.sqrt(D)
    u = lambda k, shape: jax.random.uniform(k, shape, jnp.float32, -bound, bound)
    return {
        "w1": u(ks[0], (D, D)), "b1": u(ks[1], (D,)),
        "w2": u(ks[2], (D, D)), "b2": u(ks[3], (D,)),
        "w3": u(ks[4], (D, D)), "b3": u(ks[5], (D,)),
    }


def reference_forward(x, folded):
    """Pure-JAX reference using the SAME bf16-quantized, mask-folded weights,
    so the allclose check validates the kernel math (only MXU rounding differs)."""
    B = x.shape[0]
    D = folded["wt1"].shape[0]
    w1 = folded["wt1"].astype(jnp.float32)
    w2 = folded["wt2"].astype(jnp.float32)
    w3 = folded["wt3"].astype(jnp.float32)
    b = folded["biases"]
    h = x.reshape(B, D)
    h = jnp.maximum(h @ w1 + b[0], 0.0)
    h = jnp.maximum(h @ w2 + b[1], 0.0)
    h = h @ w3 + b[2]
    return jax.nn.log_sigmoid(h)


if __name__ == "__main__":
    # Small MNIST-like shapes: batch=8, h=w=16 -> dimensionality D=256
    B, H, W = 8, 16, 16
    D = H * W

    key = jax.random.PRNGKey(0)
    k_x, k_p = jax.random.split(key)
    x = jax.random.uniform(k_x, (B, H, W), jnp.float32)  # binarized-image-like input
    params = init_params(k_p, D)
    folded = prepare_params(params)

    out = simple_mnist_made_forward(x, folded)
    out = jax.block_until_ready(out)

    ref = reference_forward(x, folded)
    # bf16 MXU operands -> compare against the bf16-weight reference with a
    # tolerance that covers MXU vs XLA rounding differences.
    np.testing.assert_allclose(np.asarray(out), np.asarray(ref), rtol=2e-2, atol=2e-2)

    print("KERNEL_OK")
</pallas_src>

<mosaic_0001>
module attributes {stable_mosaic.version = 11 : i64} {
  func.func @made_kernel(%arg0: memref<8x256xf32, #tpu.memory_space<vmem>>, %arg1: memref<256x256xbf16, #tpu.memory_space<vmem>>, %arg2: memref<256x256xbf16, #tpu.memory_space<vmem>>, %arg3: memref<256x256xbf16, #tpu.memory_space<vmem>>, %arg4: memref<3x256xf32, #tpu.memory_space<vmem>>, %arg5: memref<8x256xf32, #tpu.memory_space<vmem>>) attributes {dimension_semantics = [], scalar_prefetch = 0 : i64, scratch_operands = 0 : i64, tpu.core_type = #tpu.core_type<tc>} {
    %c0 = arith.constant 0 : index
    %c0_0 = arith.constant 0 : index
    %0 = vector.load %arg0[%c0, %c0_0] : memref<8x256xf32, #tpu.memory_space<vmem>>, vector<8x256xf32>
    %1 = arith.truncf %0 : vector<8x256xf32> to vector<8x256xbf16>
    %c0_1 = arith.constant 0 : index
    %c0_2 = arith.constant 0 : index
    %2 = vector.load %arg1[%c0_1, %c0_2] : memref<256x256xbf16, #tpu.memory_space<vmem>>, vector<256x256xbf16>
    %cst = arith.constant dense<0.000000e+00> : vector<8x256xf32>
    %3 = tpu.matmul %1, %2, %cst {dimension_numbers = #tpu.dot_dimension_numbers<[1], [0], [0], [1], [0, 0, 1, 1], [], []>} : vector<8x256xbf16>, vector<256x256xbf16>, vector<8x256xf32> -> vector<8x256xf32>
    %c0_3 = arith.constant 0 : index
    %c0_4 = arith.constant 0 : index
    %4 = vector.load %arg4[%c0_3, %c0_4] : memref<3x256xf32, #tpu.memory_space<vmem>>, vector<1x256xf32>
    %5 = vector.broadcast %4 : vector<1x256xf32> to vector<8x256xf32>
    %6 = arith.addf %3, %5 : vector<8x256xf32>
    %cst_5 = arith.constant 0.000000e+00 : f32
    %7 = vector.broadcast %cst_5 : f32 to vector<8x256xf32>
    %8 = arith.maximumf %6, %7 : vector<8x256xf32>
    %9 = arith.truncf %8 : vector<8x256xf32> to vector<8x256xbf16>
    %c0_6 = arith.constant 0 : index
    %c0_7 = arith.constant 0 : index
    %10 = vector.load %arg2[%c0_6, %c0_7] : memref<256x256xbf16, #tpu.memory_space<vmem>>, vector<256x256xbf16>
    %cst_8 = arith.constant dense<0.000000e+00> : vector<8x256xf32>
    %11 = tpu.matmul %9, %10, %cst_8 {dimension_numbers = #tpu.dot_dimension_numbers<[1], [0], [0], [1], [0, 0, 1, 1], [], []>} : vector<8x256xbf16>, vector<256x256xbf16>, vector<8x256xf32> -> vector<8x256xf32>
    %c1 = arith.constant 1 : index
    %c0_9 = arith.constant 0 : index
    %12 = vector.load %arg4[%c1, %c0_9] : memref<3x256xf32, #tpu.memory_space<vmem>>, vector<1x256xf32>
    %13 = vector.broadcast %12 : vector<1x256xf32> to vector<8x256xf32>
    %14 = arith.addf %11, %13 : vector<8x256xf32>
    %cst_10 = arith.constant 0.000000e+00 : f32
    %15 = vector.broadcast %cst_10 : f32 to vector<8x256xf32>
    %16 = arith.maximumf %14, %15 : vector<8x256xf32>
    %17 = arith.truncf %16 : vector<8x256xf32> to vector<8x256xbf16>
    %c0_11 = arith.constant 0 : index
    %c0_12 = arith.constant 0 : index
    %18 = vector.load %arg3[%c0_11, %c0_12] : memref<256x256xbf16, #tpu.memory_space<vmem>>, vector<256x256xbf16>
    %cst_13 = arith.constant dense<0.000000e+00> : vector<8x256xf32>
    %19 = tpu.matmul %17, %18, %cst_13 {dimension_numbers = #tpu.dot_dimension_numbers<[1], [0], [0], [1], [0, 0, 1, 1], [], []>} : vector<8x256xbf16>, vector<256x256xbf16>, vector<8x256xf32> -> vector<8x256xf32>
    %c2 = arith.constant 2 : index
    %c0_14 = arith.constant 0 : index
    %20 = vector.load %arg4[%c2, %c0_14] : memref<3x256xf32, #tpu.memory_space<vmem>>, vector<1x256xf32>
    %21 = vector.broadcast %20 : vector<1x256xf32> to vector<8x256xf32>
    %22 = arith.addf %19, %21 : vector<8x256xf32>
    %cst_15 = arith.constant 0.000000e+00 : f32
    %23 = vector.broadcast %cst_15 : f32 to vector<8x256xf32>
    %24 = arith.minimumf %22, %23 : vector<8x256xf32>
    %25 = math.absf %22 : vector<8x256xf32>
    %cst_16 = arith.constant 0.000000e+00 : f32
    %26 = vector.broadcast %cst_16 : f32 to vector<8x256xf32>
    %27 = arith.subf %26, %25 : vector<8x256xf32>
    %28 = math.exp %27 : vector<8x256xf32>
    %29 = math.log1p %28 : vector<8x256xf32>
    %30 = arith.subf %24, %29 : vector<8x256xf32>
    %c0_17 = arith.constant 0 : index
    %c0_18 = arith.constant 0 : index
    %31 = vector.load %arg5[%c0_17, %c0_18] : memref<8x256xf32, #tpu.memory_space<vmem>>, vector<8x256xf32>
    tpu.vector_store %arg5[%c0_17, %c0_18], %30 {strides = array<i32>} : memref<8x256xf32, #tpu.memory_space<vmem>>, vector<8x256xf32>,
    return
  }
}

</mosaic_0001>

<llo_original>
// kernel: tpu_custom_call.1
$region0: #{tpu_custom_call.1}
  #allocation0 [shape = 'u32[]', space=smem, size = 0x4, offset = 0x4, fixed_abs, tag = 'smem constant byte address 0x4 - core index']
  #allocation1 [shape = 'u32[72,128]{1,0:T(1,128)}', space=vmem, size = 0x9000, scoped, tag = 'internal scratch']
  %s0 = inlined_call_operand.hbm [shape: f32[8,256], index: 0, kind: input, shape index: {}]
  %s1 = inlined_call_operand.hbm [shape: bf16[256,256], index: 1, kind: input, shape index: {}]
  %s2 = inlined_call_operand.hbm [shape: bf16[256,256], index: 2, kind: input, shape index: {}]
  %s3 = inlined_call_operand.hbm [shape: bf16[256,256], index: 3, kind: input, shape index: {}]
  %s4 = inlined_call_operand.hbm [shape: f32[3,256], index: 4, kind: input, shape index: {}]
  %s5 = inlined_call_operand.hbm [shape: f32[8,256], index: 5, kind: output, shape index: {}]
  %s6 = sld [smem:[#allocation0]]
  $region50: #{tpu_custom_call.1} parent=0
    _
  %s8 = ssub.s32 1, %s6
  %s9 = scalar_select 0, %s8, %s6
  $region1: #{tpu_custom_call.1} parent=0
    #allocation2 [shape = 'u8[8192]{0}', space=vmem, size = 0x2000, scoped, tag = 'input window, operand 0, single buffered']
    #allocation3 [shape = 's32[1]{0}', space=sflag, size = 0x4, scoped, tag = 'scoped memory for tpu_custom_call.1']
    #allocation4 [shape = 's32[1]{0}', space=sflag, size = 0x4, scoped, tag = 'scoped memory for tpu_custom_call.1']
    #allocation5 [shape = 'u8[131072]{0}', space=vmem, size = 0x20000, scoped, tag = 'input window, operand 1, single buffered']
    #allocation6 [shape = 's32[1]{0}', space=sflag, size = 0x4, scoped, tag = 'scoped memory for tpu_custom_call.1']
    #allocation7 [shape = 'u8[131072]{0}', space=vmem, size = 0x20000, scoped, tag = 'input window, operand 2, single buffered']
    #allocation8 [shape = 'u8[131072]{0}', space=vmem, size = 0x20000, scoped, tag = 'input window, operand 3, single buffered']
    #allocation9 [shape = 's32[1]{0}', space=sflag, size = 0x4, scoped, tag = 'scoped memory for tpu_custom_call.1']
    #allocation10 [shape = 'u8[4096]{0}', space=vmem, size = 0x1000, scoped, tag = 'input window, operand 4, single buffered']
    #allocation11 [shape = 'u8[8192]{0}', space=vmem, size = 0x2000, scoped, tag = 'output window, operand 0, single buffered']
    %10 = vsyncpa [#allocation3], 0
    %11 = vsyncpa [#allocation6], 0
    %12 = vsyncpa [#allocation9], 0
    %13 = vsyncpa [#allocation4], 0
    // Predicated region
    $region2: #{tpu_custom_call.1} parent=1 // pred_check
      _
    $region3: #{tpu_custom_call.1} parent=1 // pred_check_branch
      %15 = sbr.rel (0) target = $region5
    $region4: #{tpu_custom_call.1} parent=1 // pred_region
      %17 = vsyncadd [#allocation3], 0
      %s19 = sshll.u32 %s0, 4
      %s20 = int_to_ptr.hbm [resolvable:$true] %s19
      %s21 = sshll.u32 [#allocation2], 4
      %s22 = int_to_ptr.vmem [resolvable:$true] %s21
      %24 = dma.hbm_to_vmem [thread:$0]  %s20, 256, %s22, [#allocation3]
    $region5: #{tpu_custom_call.1} parent=1 // pred_fallthru
      _
    // Predicated region
    $region6: #{tpu_custom_call.1} parent=1 // pred_check
      _
    $region7: #{tpu_custom_call.1} parent=1 // pred_check_branch
      %26 = sbr.rel (0) target = $region9
    $region8: #{tpu_custom_call.1} parent=1 // pred_region
      %28 = vsyncadd [#allocation6], 0
      %s29 = sshll.u32 %s1, 4
      %s30 = int_to_ptr.hbm [resolvable:$true] %s29
      %s31 = sshll.u32 [#allocation5], 4
      %s32 = int_to_ptr.vmem [resolvable:$true] %s31
      %37 = dma.hbm_to_vmem [thread:$0]  %s30, 4096, %s32, [#allocation6], 128, 128, 8
    $region9: #{tpu_custom_call.1} parent=1 // pred_fallthru
      _
    // Predicated region
    $region10: #{tpu_custom_call.1} parent=1 // pred_check
      _
    $region11: #{tpu_custom_call.1} parent=1 // pred_check_branch
      %39 = sbr.rel (0) target = $region13
    $region12: #{tpu_custom_call.1} parent=1 // pred_region
      %41 = vsyncadd [#allocation6], 0
      %s42 = sshll.u32 %s2, 4
      %s43 = int_to_ptr.hbm [resolvable:$true] %s42
      %s44 = sshll.u32 [#allocation7], 4
      %s45 = int_to_ptr.vmem [resolvable:$true] %s44
      %50 = dma.hbm_to_vmem [thread:$0]  %s43, 4096, %s45, [#allocation6], 128, 128, 8
    $region13: #{tpu_custom_call.1} parent=1 // pred_fallthru
      _
    // Predicated region
    $region14: #{tpu_custom_call.1} parent=1 // pred_check
      _
    $region15: #{tpu_custom_call.1} parent=1 // pred_check_branch
      %52 = sbr.rel (0) target = $region17
    $region16: #{tpu_custom_call.1} parent=1 // pred_region
      %54 = vsyncadd [#allocation9], 0
      %s55 = sshll.u32 %s3, 4
      %s56 = int_to_ptr.hbm [resolvable:$true] %s55
      %s57 = sshll.u32 [#allocation8], 4
      %s58 = int_to_ptr.vmem [resolvable:$true] %s57
      %63 = dma.hbm_to_vmem [thread:$0]  %s56, 4096, %s58, [#allocation9], 128, 128, 8
    $region17: #{tpu_custom_call.1} parent=1 // pred_fallthru
      _
    // Predicated region
    $region18: #{tpu_custom_call.1} parent=1 // pred_check
      _
    $region19: #{tpu_custom_call.1} parent=1 // pred_check_branch
      %65 = sbr.rel (0) target = $region21
    $region20: #{tpu_custom_call.1} parent=1 // pred_region
      %67 = vsyncadd [#allocation9], 0
      %s69 = sshll.u32 %s4, 4
      %s70 = int_to_ptr.hbm [resolvable:$true] %s69
      %s71 = sshll.u32 [#allocation10], 4
      %s72 = int_to_ptr.vmem [resolvable:$true] %s71
      %74 = dma.hbm_to_vmem [thread:$0]  %s70, 128, %s72, [#allocation9]
    $region21: #{tpu_custom_call.1} parent=1 // pred_fallthru
      _
    // Predicated region
    $region22: #{tpu_custom_call.1} parent=1 // pred_check
      _
    $region23: #{tpu_custom_call.1} parent=1 // pred_check_branch
      %76 = sbr.rel (0) target = $region25
    $region24: #{tpu_custom_call.1} parent=1 // pred_region
      %78 = dma.done [#allocation3], 256
    $region25: #{tpu_custom_call.1} parent=1 // pred_fallthru
      _
    // Predicated region
    $region26: #{tpu_custom_call.1} parent=1 // pred_check
      _
    $region27: #{tpu_custom_call.1} parent=1 // pred_check_branch
      %80 = sbr.rel (0) target = $region29
    $region28: #{tpu_custom_call.1} parent=1 // pred_region
      %82 = dma.done [#allocation6], 4096
    $region29: #{tpu_custom_call.1} parent=1 // pred_fallthru
      _
    // Predicated region
    $region30: #{tpu_custom_call.1} parent=1 // pred_check
      _
    $region31: #{tpu_custom_call.1} parent=1 // pred_check_branch
      %84 = sbr.rel (0) target = $region33
    $region32: #{tpu_custom_call.1} parent=1 // pred_region
      %86 = dma.done [#allocation6], 4096
    $region33: #{tpu_custom_call.1} parent=1 // pred_fallthru
      _
    // Predicated region
    $region34: #{tpu_custom_call.1} parent=1 // pred_check
      _
    $region35: #{tpu_custom_call.1} parent=1 // pred_check_branch
      %88 = sbr.rel (0) target = $region37
    $region36: #{tpu_custom_call.1} parent=1 // pred_region
      %90 = dma.done [#allocation9], 4096
    $region37: #{tpu_custom_call.1} parent=1 // pred_fallthru
      _
    // Predicated region
    $region38: #{tpu_custom_call.1} parent=1 // pred_check
      _
    $region39: #{tpu_custom_call.1} parent=1 // pred_check_branch
      %92 = sbr.rel (0) target = $region41
    $region40: #{tpu_custom_call.1} parent=1 // pred_region
      %94 = dma.done [#allocation9], 128
    $region41: #{tpu_custom_call.1} parent=1 // pred_fallthru
      _
    %v95 = vld [vmem:[#allocation2] sm:$0xff]
    %v96 = vld [vmem:[#allocation2 + $0x8] sm:$0xff]
    %v97 = vpack.c.bf16 %v95, %v95
    %v98 = vpack.c.bf16 %v96, %v96
    %v99 = vld [vmem:[#allocation5] sm:$0xff]
    %v100 = vld [vmem:[#allocation5 + $0x8] sm:$0xff]
    %v101 = vld [vmem:[#allocation5 + $0x10] sm:$0xff]
    %v102 = vld [vmem:[#allocation5 + $0x18] sm:$0xff]
    %v103 = vld [vmem:[#allocation5 + $0x20] sm:$0xff]
    %v104 = vld [vmem:[#allocation5 + $0x28] sm:$0xff]
    %v105 = vld [vmem:[#allocation5 + $0x30] sm:$0xff]
    %v106 = vld [vmem:[#allocation5 + $0x38] sm:$0xff]
    %v107 = vld [vmem:[#allocation5 + $0x40] sm:$0xff]
    %v108 = vld [vmem:[#allocation5 + $0x48] sm:$0xff]
    %v109 = vld [vmem:[#allocation5 + $0x50] sm:$0xff]
    %v110 = vld [vmem:[#allocation5 + $0x58] sm:$0xff]
    %v111 = vld [vmem:[#allocation5 + $0x60] sm:$0xff]
    %v112 = vld [vmem:[#allocation5 + $0x68] sm:$0xff]
    %v113 = vld [vmem:[#allocation5 + $0x70] sm:$0xff]
    %v114 = vld [vmem:[#allocation5 + $0x78] sm:$0xff]
    %v115 = vld [vmem:[#allocation5 + $0x80] sm:$0xff]
    %v116 = vld [vmem:[#allocation5 + $0x88] sm:$0xff]
    %v117 = vld [vmem:[#allocation5 + $0x90] sm:$0xff]
    %v118 = vld [vmem:[#allocation5 + $0x98] sm:$0xff]
    %v119 = vld [vmem:[#allocation5 + $0xa0] sm:$0xff]
    %v120 = vld [vmem:[#allocation5 + $0xa8] sm:$0xff]
    %v121 = vld [vmem:[#allocation5 + $0xb0] sm:$0xff]
    %v122 = vld [vmem:[#allocation5 + $0xb8] sm:$0xff]
    %v123 = vld [vmem:[#allocation5 + $0xc0] sm:$0xff]
    %v124 = vld [vmem:[#allocation5 + $0xc8] sm:$0xff]
    %v125 = vld [vmem:[#allocation5 + $0xd0] sm:$0xff]
    %v126 = vld [vmem:[#allocation5 + $0xd8] sm:$0xff]
    %v127 = vld [vmem:[#allocation5 + $0xe0] sm:$0xff]
    %v128 = vld [vmem:[#allocation5 + $0xe8] sm:$0xff]
    %v129 = vld [vmem:[#allocation5 + $0xf0] sm:$0xff]
    %v130 = vld [vmem:[#allocation5 + $0xf8] sm:$0xff]
    %v131 = vld [vmem:[#allocation10] ss:$4 sm:$0x3]
    %v133 = vperm.slane %v131, 0
    %v134 = vperm.slane %v131, 1
    %v169 = vunpack.c.l.b16 %v99
    %v170 = vunpack.c.h.b16 %v99
    %v171 = vunpack.c.l.b16 %v100
    %v172 = vunpack.c.h.b16 %v100
    %v173 = vunpack.c.l.b16 %v101
    %v174 = vunpack.c.h.b16 %v101
    %v175 = vunpack.c.l.b16 %v102
    %v176 = vunpack.c.h.b16 %v102
    %v177 = vunpack.c.l.b16 %v103
    %v178 = vunpack.c.h.b16 %v103
    %v179 = vunpack.c.l.b16 %v104
    %v180 = vunpack.c.h.b16 %v104
    %v181 = vunpack.c.l.b16 %v105
    %v182 = vunpack.c.h.b16 %v105
    %v183 = vunpack.c.l.b16 %v106
    %v184 = vunpack.c.h.b16 %v106
    %v185 = vunpack.c.l.b16 %v107
    %v186 = vunpack.c.h.b16 %v107
    %v187 = vunpack.c.l.b16 %v108
    %v188 = vunpack.c.h.b16 %v108
    %v189 = vunpack.c.l.b16 %v109
    %v190 = vunpack.c.h.b16 %v109
    %v191 = vunpack.c.l.b16 %v110
    %v192 = vunpack.c.h.b16 %v110
    %v193 = vunpack.c.l.b16 %v111
    %v194 = vunpack.c.h.b16 %v111
    %v195 = vunpack.c.l.b16 %v112
    %v196 = vunpack.c.h.b16 %v112
    %v197 = vunpack.c.l.b16 %v113
    %v198 = vunpack.c.h.b16 %v113
    %v199 = vunpack.c.l.b16 %v114
    %v200 = vunpack.c.h.b16 %v114
    %v201 = vunpack.c.l.b16 %v115
    %v202 = vunpack.c.h.b16 %v115
    %v203 = vunpack.c.l.b16 %v116
    %v204 = vunpack.c.h.b16 %v116
    %v205 = vunpack.c.l.b16 %v117
    %v206 = vunpack.c.h.b16 %v117
    %v207 = vunpack.c.l.b16 %v118
    %v208 = vunpack.c.h.b16 %v118
    %v209 = vunpack.c.l.b16 %v119
    %v210 = vunpack.c.h.b16 %v119
    %v211 = vunpack.c.l.b16 %v120
    %v212 = vunpack.c.h.b16 %v120
    %v213 = vunpack.c.l.b16 %v121
    %v214 = vunpack.c.h.b16 %v121
    %v215 = vunpack.c.l.b16 %v122
    %v216 = vunpack.c.h.b16 %v122
    %v217 = vunpack.c.l.b16 %v123
    %v218 = vunpack.c.h.b16 %v123
    %v219 = vunpack.c.l.b16 %v124
    %v220 = vunpack.c.h.b16 %v124
    %v221 = vunpack.c.l.b16 %v125
    %v222 = vunpack.c.h.b16 %v125
    %v223 = vunpack.c.l.b16 %v126
    %v224 = vunpack.c.h.b16 %v126
    %v225 = vunpack.c.l.b16 %v127
    %v226 = vunpack.c.h.b16 %v127
    %v227 = vunpack.c.l.b16 %v128
    %v228 = vunpack.c.h.b16 %v128
    %v229 = vunpack.c.l.b16 %v129
    %v230 = vunpack.c.h.b16 %v129
    %v231 = vunpack.c.l.b16 %v130
    %v232 = vunpack.c.h.b16 %v130
    %v233 = vpack.c.b16 %v171, %v169
    %v234 = vpack.c.b16 %v172, %v170
    %v235 = vpack.c.b16 %v175, %v173
    %v236 = vpack.c.b16 %v176, %v174
    %v237 = vpack.c.b16 %v179, %v177
    %v238 = vpack.c.b16 %v180, %v178
    %v239 = vpack.c.b16 %v183, %v181
    %v240 = vpack.c.b16 %v184, %v182
    %v241 = vpack.c.b16 %v187, %v185
    %v242 = vpack.c.b16 %v188, %v186
    %v243 = vpack.c.b16 %v191, %v189
    %v244 = vpack.c.b16 %v192, %v190
    %v245 = vpack.c.b16 %v195, %v193
    %v246 = vpack.c.b16 %v196, %v194
    %v247 = vpack.c.b16 %v199, %v197
    %v248 = vpack.c.b16 %v200, %v198
    %v249 = vpack.c.b16 %v203, %v201
    %v250 = vpack.c.b16 %v204, %v202
    %v251 = vpack.c.b16 %v207, %v205
    %v252 = vpack.c.b16 %v208, %v206
    %v253 = vpack.c.b16 %v211, %v209
    %v254 = vpack.c.b16 %v212, %v210
    %v255 = vpack.c.b16 %v215, %v213
    %v256 = vpack.c.b16 %v216, %v214
    %v257 = vpack.c.b16 %v219, %v217
    %v258 = vpack.c.b16 %v220, %v218
    %v259 = vpack.c.b16 %v223, %v221
    %v260 = vpack.c.b16 %v224, %v222
    %v261 = vpack.c.b16 %v227, %v225
    %v262 = vpack.c.b16 %v228, %v226
    %v263 = vpack.c.b16 %v231, %v229
    %v264 = vpack.c.b16 %v232, %v230
    %297 = vmatpush.bf16.msra.mxu0 %v247
    %298 = vmatpush.bf16.msra.mxu0 %v245
    %299 = vmatpush.bf16.msra.mxu0 %v243
    %300 = vmatpush.bf16.msra.mxu0 %v241
    %301 = vmatpush.bf16.msra.mxu0 %v239
    %302 = vmatpush.bf16.msra.mxu0 %v237
    %303 = vmatpush.bf16.msra.mxu0 %v235
    %304 = vmatpush.bf16.msra.mxu0 %v233
    %305 = vmatmul.bf16.gmra.mxu0 %v97
    %v306 = vpop.f32.mrf.mxu0
    %v307 = vadd.f32 %v133, %v306
    %v308 = vpop.f32.mrf.mxu0
    %309 = vdwg.mxu0
    %310 = vmatpush.bf16.msra.mxu0 %v263
    %311 = vmatpush.bf16.msra.mxu0 %v261
    %312 = vmatpush.bf16.msra.mxu0 %v259
    %313 = vmatpush.bf16.msra.mxu0 %v257
    %314 = vmatpush.bf16.msra.mxu0 %v255
    %315 = vmatpush.bf16.msra.mxu0 %v253
    %316 = vmatpush.bf16.msra.mxu0 %v251
    %317 = vmatpush.bf16.msra.mxu0 %v249
    %318 = vmatmul.bf16.gmra.mxu0 %v98
    %v319 = vpop.f32.mrf.mxu0
    %v320 = vadd.f32 %v307, %v319
    %v321 = vpop.f32.mrf.mxu0
    %322 = vdwg.mxu0
    %323 = vmatpush.bf16.msra.mxu0 %v248
    %324 = vmatpush.bf16.msra.mxu0 %v246
    %325 = vmatpush.bf16.msra.mxu0 %v244
    %326 = vmatpush.bf16.msra.mxu0 %v242
    %327 = vmatpush.bf16.msra.mxu0 %v240
    %328 = vmatpush.bf16.msra.mxu0 %v238
    %329 = vmatpush.bf16.msra.mxu0 %v236
    %330 = vmatpush.bf16.msra.mxu0 %v234
    %331 = vmatmul.bf16.gmra.mxu0 %v97
    %v332 = vpop.f32.mrf.mxu0
    %v333 = vadd.f32 %v134, %v332
    %v334 = vpop.f32.mrf.mxu0
    %335 = vdwg.mxu0
    %336 = vmatpush.bf16.msra.mxu0 %v264
    %337 = vmatpush.bf16.msra.mxu0 %v262
    %338 = vmatpush.bf16.msra.mxu0 %v260
    %339 = vmatpush.bf16.msra.mxu0 %v258
    %340 = vmatpush.bf16.msra.mxu0 %v256
    %341 = vmatpush.bf16.msra.mxu0 %v254
    %342 = vmatpush.bf16.msra.mxu0 %v252
    %343 = vmatpush.bf16.msra.mxu0 %v250
    %344 = vmatmul.bf16.gmra.mxu0 %v98
    %v345 = vpop.f32.mrf.mxu0
    %v346 = vadd.f32 %v333, %v345
    %v347 = vpop.f32.mrf.mxu0
    %348 = vdwg.mxu0
    %v349 = vmax.f32 %v320, 0.0
    %v350 = vmax.f32 %v346, 0.0
    %v351 = vpack.c.bf16 %v349, %v349
    %v352 = vpack.c.bf16 %v350, %v350
    %v353 = vld [vmem:[#allocation7] sm:$0xff]
    %v354 = vld [vmem:[#allocation7 + $0x8] sm:$0xff]
    %v355 = vld [vmem:[#allocation7 + $0x10] sm:$0xff]
    %v356 = vld [vmem:[#allocation7 + $0x18] sm:$0xff]
    %v357 = vld [vmem:[#allocation7 + $0x20] sm:$0xff]
    %v358 = vld [vmem:[#allocation7 + $0x28] sm:$0xff]
    %v359 = vld [vmem:[#allocation7 + $0x30] sm:$0xff]
    %v360 = vld [vmem:[#allocation7 + $0x38] sm:$0xff]
    %v361 = vld [vmem:[#allocation7 + $0x40] sm:$0xff]
    %v362 = vld [vmem:[#allocation7 + $0x48] sm:$0xff]
    %v363 = vld [vmem:[#allocation7 + $0x50] sm:$0xff]
    %v364 = vld [vmem:[#allocation7 + $0x58] sm:$0xff]
    %v365 = vld [vmem:[#allocation7 + $0x60] sm:$0xff]
    %v366 = vld [vmem:[#allocation7 + $0x68] sm:$0xff]
    %v367 = vld [vmem:[#allocation7 + $0x70] sm:$0xff]
    %v368 = vld [vmem:[#allocation7 + $0x78] sm:$0xff]
    %v369 = vld [vmem:[#allocation7 + $0x80] sm:$0xff]
    %v370 = vld [vmem:[#allocation7 + $0x88] sm:$0xff]
    %v371 = vld [vmem:[#allocation7 + $0x90] sm:$0xff]
    %v372 = vld [vmem:[#allocation7 + $0x98] sm:$0xff]
    %v373 = vld [vmem:[#allocation7 + $0xa0] sm:$0xff]
    %v374 = vld [vmem:[#allocation7 + $0xa8] sm:$0xff]
    %v375 = vld [vmem:[#allocation7 + $0xb0] sm:$0xff]
    %v376 = vld [vmem:[#allocation7 + $0xb8] sm:$0xff]
    %v377 = vld [vmem:[#allocation7 + $0xc0] sm:$0xff]
    %v378 = vld [vmem:[#allocation7 + $0xc8] sm:$0xff]
    %v379 = vld [vmem:[#allocation7 + $0xd0] sm:$0xff]
    %v380 = vld [vmem:[#allocation7 + $0xd8] sm:$0xff]
    %v381 = vld [vmem:[#allocation7 + $0xe0] sm:$0xff]
    %v382 = vld [vmem:[#allocation7 + $0xe8] sm:$0xff]
    %v383 = vld [vmem:[#allocation7 + $0xf0] sm:$0xff]
    %v384 = vld [vmem:[#allocation7 + $0xf8] sm:$0xff]
    %s385 = scalar_lea.vmem [#allocation10], 1
    %v386 = vld [vmem:[%s385] ss:$4 sm:$0x3]
    %v388 = vperm.slane %v386, 0
    %v389 = vperm.slane %v386, 1
    %v424 = vunpack.c.l.b16 %v353
    %v425 = vunpack.c.h.b16 %v353
    %v426 = vunpack.c.l.b16 %v354
    %v427 = vunpack.c.h.b16 %v354
    %v428 = vunpack.c.l.b16 %v355
    %v429 = vunpack.c.h.b16 %v355
    %v430 = vunpack.c.l.b16 %v356
    %v431 = vunpack.c.h.b16 %v356
    %v432 = vunpack.c.l.b16 %v357
    %v433 = vunpack.c.h.b16 %v357
    %v434 = vunpack.c.l.b16 %v358
    %v435 = vunpack.c.h.b16 %v358
    %v436 = vunpack.c.l.b16 %v359
    %v437 = vunpack.c.h.b16 %v359
    %v438 = vunpack.c.l.b16 %v360
    %v439 = vunpack.c.h.b16 %v360
    %v440 = vunpack.c.l.b16 %v361
    %v441 = vunpack.c.h.b16 %v361
    %v442 = vunpack.c.l.b16 %v362
    %v443 = vunpack.c.h.b16 %v362
    %v444 = vunpack.c.l.b16 %v363
    %v445 = vunpack.c.h.b16 %v363
    %v446 = vunpack.c.l.b16 %v364
    %v447 = vunpack.c.h.b16 %v364
    %v448 = vunpack.c.l.b16 %v365
    %v449 = vunpack.c.h.b16 %v365
    %v450 = vunpack.c.l.b16 %v366
    %v451 = vunpack.c.h.b16 %v366
    %v452 = vunpack.c.l.b16 %v367
    %v453 = vunpack.c.h.b16 %v367
    %v454 = vunpack.c.l.b16 %v368
    %v455 = vunpack.c.h.b16 %v368
    %v456 = vunpack.c.l.b16 %v369
    %v457 = vunpack.c.h.b16 %v369
    %v458 = vunpack.c.l.b16 %v370
    %v459 = vunpack.c.h.b16 %v370
    %v460 = vunpack.c.l.b16 %v371
    %v461 = vunpack.c.h.b16 %v371
    %v462 = vunpack.c.l.b16 %v372
    %v463 = vunpack.c.h.b16 %v372
    %v464 = vunpack.c.l.b16 %v373
    %v465 = vunpack.c.h.b16 %v373
    %v466 = vunpack.c.l.b16 %v374
    %v467 = vunpack.c.h.b16 %v374
    %v468 = vunpack.c.l.b16 %v375
    %v469 = vunpack.c.h.b16 %v375
    %v470 = vunpack.c.l.b16 %v376
    %v471 = vunpack.c.h.b16 %v376
    %v472 = vunpack.c.l.b16 %v377
    %v473 = vunpack.c.h.b16 %v377
    %v474 = vunpack.c.l.b16 %v378
    %v475 = vunpack.c.h.b16 %v378
    %v476 = vunpack.c.l.b16 %v379
    %v477 = vunpack.c.h.b16 %v379
    %v478 = vunpack.c.l.b16 %v380
    %v479 = vunpack.c.h.b16 %v380
    %v480 = vunpack.c.l.b16 %v381
    %v481 = vunpack.c.h.b16 %v381
    %v482 = vunpack.c.l.b16 %v382
    %v483 = vunpack.c.h.b16 %v382
    %v484 = vunpack.c.l.b16 %v383
    %v485 = vunpack.c.h.b16 %v383
    %v486 = vunpack.c.l.b16 %v384
    %v487 = vunpack.c.h.b16 %v384
    %v488 = vpack.c.b16 %v426, %v424
    %v489 = vpack.c.b16 %v427, %v425
    %v490 = vpack.c.b16 %v430, %v428
    %v491 = vpack.c.b16 %v431, %v429
    %v492 = vpack.c.b16 %v434, %v432
    %v493 = vpack.c.b16 %v435, %v433
    %v494 = vpack.c.b16 %v438, %v436
    %v495 = vpack.c.b16 %v439, %v437
    %v496 = vpack.c.b16 %v442, %v440
    %v497 = vpack.c.b16 %v443, %v441
    %v498 = vpack.c.b16 %v446, %v444
    %v499 = vpack.c.b16 %v447, %v445
    %v500 = vpack.c.b16 %v450, %v448
    %v501 = vpack.c.b16 %v451, %v449
    %v502 = vpack.c.b16 %v454, %v452
    %v503 = vpack.c.b16 %v455, %v453
    %v504 = vpack.c.b16 %v458, %v456
    %v505 = vpack.c.b16 %v459, %v457
    %v506 = vpack.c.b16 %v462, %v460
    %v507 = vpack.c.b16 %v463, %v461
    %v508 = vpack.c.b16 %v466, %v464
    %v509 = vpack.c.b16 %v467, %v465
    %v510 = vpack.c.b16 %v470, %v468
    %v511 = vpack.c.b16 %v471, %v469
    %v512 = vpack.c.b16 %v474, %v472
    %v513 = vpack.c.b16 %v475, %v473
    %v514 = vpack.c.b16 %v478, %v476
    %v515 = vpack.c.b16 %v479, %v477
    %v516 = vpack.c.b16 %v482, %v480
    %v517 = vpack.c.b16 %v483, %v481
    %v518 = vpack.c.b16 %v486, %v484
    %v519 = vpack.c.b16 %v487, %v485
    %552 = vmatpush.bf16.msra.mxu0 %v502
    %553 = vmatpush.bf16.msra.mxu0 %v500
    %554 = vmatpush.bf16.msra.mxu0 %v498
    %555 = vmatpush.bf16.msra.mxu0 %v496
    %556 = vmatpush.bf16.msra.mxu0 %v494
    %557 = vmatpush.bf16.msra.mxu0 %v492
    %558 = vmatpush.bf16.msra.mxu0 %v490
    %559 = vmatpush.bf16.msra.mxu0 %v488
    %560 = vmatmul.bf16.gmra.mxu0 %v351
    %v561 = vpop.f32.mrf.mxu0
    %v562 = vadd.f32 %v388, %v561
    %v563 = vpop.f32.mrf.mxu0
    %564 = vdwg.mxu0
    %565 = vmatpush.bf16.msra.mxu0 %v518
    %566 = vmatpush.bf16.msra.mxu0 %v516
    %567 = vmatpush.bf16.msra.mxu0 %v514
    %568 = vmatpush.bf16.msra.mxu0 %v512
    %569 = vmatpush.bf16.msra.mxu0 %v510
    %570 = vmatpush.bf16.msra.mxu0 %v508
    %571 = vmatpush.bf16.msra.mxu0 %v506
    %572 = vmatpush.bf16.msra.mxu0 %v504
    %573 = vmatmul.bf16.gmra.mxu0 %v352
    %v574 = vpop.f32.mrf.mxu0
    %v575 = vadd.f32 %v562, %v574
    %v576 = vpop.f32.mrf.mxu0
    %577 = vdwg.mxu0
    %578 = vmatpush.bf16.msra.mxu0 %v503
    %579 = vmatpush.bf16.msra.mxu0 %v501
    %580 = vmatpush.bf16.msra.mxu0 %v499
    %581 = vmatpush.bf16.msra.mxu0 %v497
    %582 = vmatpush.bf16.msra.mxu0 %v495
    %583 = vmatpush.bf16.msra.mxu0 %v493
    %584 = vmatpush.bf16.msra.mxu0 %v491
    %585 = vmatpush.bf16.msra.mxu0 %v489
    %586 = vmatmul.bf16.gmra.mxu0 %v351
    %v587 = vpop.f32.mrf.mxu0
    %v588 = vadd.f32 %v389, %v587
    %v589 = vpop.f32.mrf.mxu0
    %590 = vdwg.mxu0
    %591 = vmatpush.bf16.msra.mxu0 %v519
    %592 = vmatpush.bf16.msra.mxu0 %v517
    %593 = vmatpush.bf16.msra.mxu0 %v515
    %594 = vmatpush.bf16.msra.mxu0 %v513
    %595 = vmatpush.bf16.msra.mxu0 %v511
    %596 = vmatpush.bf16.msra.mxu0 %v509
    %597 = vmatpush.bf16.msra.mxu0 %v507
    %598 = vmatpush.bf16.msra.mxu0 %v505
    %599 = vmatmul.bf16.gmra.mxu0 %v352
    %v600 = vpop.f32.mrf.mxu0
    %v601 = vadd.f32 %v588, %v600
    %v602 = vpop.f32.mrf.mxu0
    %603 = vdwg.mxu0
    %v604 = vmax.f32 %v575, 0.0
    %v605 = vmax.f32 %v601, 0.0
    %v606 = vpack.c.bf16 %v604, %v604
    %v607 = vpack.c.bf16 %v605, %v605
    %v608 = vld [vmem:[#allocation8] sm:$0xff]
    %v609 = vld [vmem:[#allocation8 + $0x8] sm:$0xff]
    %v610 = vld [vmem:[#allocation8 + $0x10] sm:$0xff]
    %v611 = vld [vmem:[#allocation8 + $0x18] sm:$0xff]
    %v612 = vld [vmem:[#allocation8 + $0x20] sm:$0xff]
    %v613 = vld [vmem:[#allocation8 + $0x28] sm:$0xff]
    %v614 = vld [vmem:[#allocation8 + $0x30] sm:$0xff]
    %v615 = vld [vmem:[#allocation8 + $0x38] sm:$0xff]
    %v616 = vld [vmem:[#allocation8 + $0x40] sm:$0xff]
    %v617 = vld [vmem:[#allocation8 + $0x48] sm:$0xff]
    %v618 = vld [vmem:[#allocation8 + $0x50] sm:$0xff]
    %v619 = vld [vmem:[#allocation8 + $0x58] sm:$0xff]
    %v620 = vld [vmem:[#allocation8 + $0x60] sm:$0xff]
    %v621 = vld [vmem:[#allocation8 + $0x68] sm:$0xff]
    %v622 = vld [vmem:[#allocation8 + $0x70] sm:$0xff]
    %v623 = vld [vmem:[#allocation8 + $0x78] sm:$0xff]
    %v624 = vld [vmem:[#allocation8 + $0x80] sm:$0xff]
    %v625 = vld [vmem:[#allocation8 + $0x88] sm:$0xff]
    %v626 = vld [vmem:[#allocation8 + $0x90] sm:$0xff]
    %v627 = vld [vmem:[#allocation8 + $0x98] sm:$0xff]
    %v628 = vld [vmem:[#allocation8 + $0xa0] sm:$0xff]
    %v629 = vld [vmem:[#allocation8 + $0xa8] sm:$0xff]
    %v630 = vld [vmem:[#allocation8 + $0xb0] sm:$0xff]
    %v631 = vld [vmem:[#allocation8 + $0xb8] sm:$0xff]
    %v632 = vld [vmem:[#allocation8 + $0xc0] sm:$0xff]
    %v633 = vld [vmem:[#allocation8 + $0xc8] sm:$0xff]
    %v634 = vld [vmem:[#allocation8 + $0xd0] sm:$0xff]
    %v635 = vld [vmem:[#allocation8 + $0xd8] sm:$0xff]
    %v636 = vld [vmem:[#allocation8 + $0xe0] sm:$0xff]
    %v637 = vld [vmem:[#allocation8 + $0xe8] sm:$0xff]
    %v638 = vld [vmem:[#allocation8 + $0xf0] sm:$0xff]
    %v639 = vld [vmem:[#allocation8 + $0xf8] sm:$0xff]
    %s640 = scalar_lea.vmem [#allocation10], 2
    %v641 = vld [vmem:[%s640] ss:$4 sm:$0x3]
    %v643 = vperm.slane %v641, 0
    %v644 = vperm.slane %v641, 1
    %v679 = vunpack.c.l.b16 %v608
    %v680 = vunpack.c.h.b16 %v608
    %v681 = vunpack.c.l.b16 %v609
    %v682 = vunpack.c.h.b16 %v609
    %v683 = vunpack.c.l.b16 %v610
    %v684 = vunpack.c.h.b16 %v610
    %v685 = vunpack.c.l.b16 %v611
    %v686 = vunpack.c.h.b16 %v611
    %v687 = vunpack.c.l.b16 %v612
    %v688 = vunpack.c.h.b16 %v612
    %v689 = vunpack.c.l.b16 %v613
    %v690 = vunpack.c.h.b16 %v613
    %v691 = vunpack.c.l.b16 %v614
    %v692 = vunpack.c.h.b16 %v614
    %v693 = vunpack.c.l.b16 %v615
    %v694 = vunpack.c.h.b16 %v615
    %v695 = vunpack.c.l.b16 %v616
    %v696 = vunpack.c.h.b16 %v616
    %v697 = vunpack.c.l.b16 %v617
    %v698 = vunpack.c.h.b16 %v617
    %v699 = vunpack.c.l.b16 %v618
    %v700 = vunpack.c.h.b16 %v618
    %v701 = vunpack.c.l.b16 %v619
    %v702 = vunpack.c.h.b16 %v619
    %v703 = vunpack.c.l.b16 %v620
    %v704 = vunpack.c.h.b16 %v620
    %v705 = vunpack.c.l.b16 %v621
    %v706 = vunpack.c.h.b16 %v621
    %v707 = vunpack.c.l.b16 %v622
    %v708 = vunpack.c.h.b16 %v622
    %v709 = vunpack.c.l.b16 %v623
    %v710 = vunpack.c.h.b16 %v623
    %v711 = vunpack.c.l.b16 %v624
    %v712 = vunpack.c.h.b16 %v624
    %v713 = vunpack.c.l.b16 %v625
    %v714 = vunpack.c.h.b16 %v625
    %v715 = vunpack.c.l.b16 %v626
    %v716 = vunpack.c.h.b16 %v626
    %v717 = vunpack.c.l.b16 %v627
    %v718 = vunpack.c.h.b16 %v627
    %v719 = vunpack.c.l.b16 %v628
    %v720 = vunpack.c.h.b16 %v628
    %v721 = vunpack.c.l.b16 %v629
    %v722 = vunpack.c.h.b16 %v629
    %v723 = vunpack.c.l.b16 %v630
    %v724 = vunpack.c.h.b16 %v630
    %v725 = vunpack.c.l.b16 %v631
    %v726 = vunpack.c.h.b16 %v631
    %v727 = vunpack.c.l.b16 %v632
    %v728 = vunpack.c.h.b16 %v632
    %v729 = vunpack.c.l.b16 %v633
    %v730 = vunpack.c.h.b16 %v633
    %v731 = vunpack.c.l.b16 %v634
    %v732 = vunpack.c.h.b16 %v634
    %v733 = vunpack.c.l.b16 %v635
    %v734 = vunpack.c.h.b16 %v635
    %v735 = vunpack.c.l.b16 %v636
    %v736 = vunpack.c.h.b16 %v636
    %v737 = vunpack.c.l.b16 %v637
    %v738 = vunpack.c.h.b16 %v637
    %v739 = vunpack.c.l.b16 %v638
    %v740 = vunpack.c.h.b16 %v638
    %v741 = vunpack.c.l.b16 %v639
    %v742 = vunpack.c.h.b16 %v639
    %v743 = vpack.c.b16 %v681, %v679
    %v744 = vpack.c.b16 %v682, %v680
    %v745 = vpack.c.b16 %v685, %v683
    %v746 = vpack.c.b16 %v686, %v684
    %v747 = vpack.c.b16 %v689, %v687
    %v748 = vpack.c.b16 %v690, %v688
    %v749 = vpack.c.b16 %v693, %v691
    %v750 = vpack.c.b16 %v694, %v692
    %v751 = vpack.c.b16 %v697, %v695
    %v752 = vpack.c.b16 %v698, %v696
    %v753 = vpack.c.b16 %v701, %v699
    %v754 = vpack.c.b16 %v702, %v700
    %v755 = vpack.c.b16 %v705, %v703
    %v756 = vpack.c.b16 %v706, %v704
    %v757 = vpack.c.b16 %v709, %v707
    %v758 = vpack.c.b16 %v710, %v708
    %v759 = vpack.c.b16 %v713, %v711
    %v760 = vpack.c.b16 %v714, %v712
    %v761 = vpack.c.b16 %v717, %v715
    %v762 = vpack.c.b16 %v718, %v716
    %v763 = vpack.c.b16 %v721, %v719
    %v764 = vpack.c.b16 %v722, %v720
    %v765 = vpack.c.b16 %v725, %v723
    %v766 = vpack.c.b16 %v726, %v724
    %v767 = vpack.c.b16 %v729, %v727
    %v768 = vpack.c.b16 %v730, %v728
    %v769 = vpack.c.b16 %v733, %v731
    %v770 = vpack.c.b16 %v734, %v732
    %v771 = vpack.c.b16 %v737, %v735
    %v772 = vpack.c.b16 %v738, %v736
    %v773 = vpack.c.b16 %v741, %v739
    %v774 = vpack.c.b16 %v742, %v740
    %807 = vmatpush.bf16.msra.mxu0 %v757
    %808 = vmatpush.bf16.msra.mxu0 %v755
    %809 = vmatpush.bf16.msra.mxu0 %v753
    %810 = vmatpush.bf16.msra.mxu0 %v751
    %811 = vmatpush.bf16.msra.mxu0 %v749
    %812 = vmatpush.bf16.msra.mxu0 %v747
    %813 = vmatpush.bf16.msra.mxu0 %v745
    %814 = vmatpush.bf16.msra.mxu0 %v743
    %815 = vmatmul.bf16.gmra.mxu0 %v606
    %v816 = vpop.f32.mrf.mxu0
    %v817 = vadd.f32 %v643, %v816
    %v818 = vpop.f32.mrf.mxu0
    %819 = vdwg.mxu0
    %820 = vmatpush.bf16.msra.mxu0 %v773
    %821 = vmatpush.bf16.msra.mxu0 %v771
    %822 = vmatpush.bf16.msra.mxu0 %v769
    %823 = vmatpush.bf16.msra.mxu0 %v767
    %824 = vmatpush.bf16.msra.mxu0 %v765
    %825 = vmatpush.bf16.msra.mxu0 %v763
    %826 = vmatpush.bf16.msra.mxu0 %v761
    %827 = vmatpush.bf16.msra.mxu0 %v759
    %828 = vmatmul.bf16.gmra.mxu0 %v607
    %v829 = vpop.f32.mrf.mxu0
    %v830 = vadd.f32 %v817, %v829
    %v831 = vpop.f32.mrf.mxu0
    %832 = vdwg.mxu0
    %833 = vmatpush.bf16.msra.mxu0 %v758
    %834 = vmatpush.bf16.msra.mxu0 %v756
    %835 = vmatpush.bf16.msra.mxu0 %v754
    %836 = vmatpush.bf16.msra.mxu0 %v752
    %837 = vmatpush.bf16.msra.mxu0 %v750
    %838 = vmatpush.bf16.msra.mxu0 %v748
    %839 = vmatpush.bf16.msra.mxu0 %v746
    %840 = vmatpush.bf16.msra.mxu0 %v744
    %841 = vmatmul.bf16.gmra.mxu0 %v606
    %v842 = vpop.f32.mrf.mxu0
    %v843 = vadd.f32 %v644, %v842
    %v844 = vpop.f32.mrf.mxu0
    %845 = vdwg.mxu0
    %846 = vmatpush.bf16.msra.mxu0 %v774
    %847 = vmatpush.bf16.msra.mxu0 %v772
    %848 = vmatpush.bf16.msra.mxu0 %v770
    %849 = vmatpush.bf16.msra.mxu0 %v768
    %850 = vmatpush.bf16.msra.mxu0 %v766
    %851 = vmatpush.bf16.msra.mxu0 %v764
    %852 = vmatpush.bf16.msra.mxu0 %v762
    %853 = vmatpush.bf16.msra.mxu0 %v760
    %854 = vmatmul.bf16.gmra.mxu0 %v607
    %v855 = vpop.f32.mrf.mxu0
    %v856 = vadd.f32 %v843, %v855
    %v857 = vpop.f32.mrf.mxu0
    %858 = vdwg.mxu0
    %v859 = vmin.f32 %v830, 0.0
    %v860 = vmin.f32 %v856, 0.0
    %v861 = vand.u32 2147483647, %v830
    %v862 = vand.u32 2147483647, %v856
    %v863 = vsub.f32 0.0, %v861
    %v864 = vsub.f32 0.0, %v862
    %v865 = vmul.f32 %v863, 1.442695
    %v866 = vpow.pop %v865
    %v867 = vmul.f32 %v864, 1.442695
    %v868 = vpow.pop %v867
    %v869 = vadd.f32 %v866, 1.0
    %v870 = vlog2.pop %v869
    %v871 = vmul.f32 %v870, 0.6931472
    %v872 = vmul.f32 -0.5, %v866
    %v873 = vadd.f32 %v872, 1.0
    %v874 = vmul.f32 %v873, %v866
    %v875 = vand.u32 2147483647, %v866
    %vm876 = vcmp.lt.f32.partialorder %v875, 0.0004427343
    %v877 = vsel %vm876, %v874, %v871
    %v878 = vadd.f32 %v868, 1.0
    %v879 = vlog2.pop %v878
    %v880 = vmul.f32 %v879, 0.6931472
    %v881 = vmul.f32 -0.5, %v868
    %v882 = vadd.f32 %v881, 1.0
    %v883 = vmul.f32 %v882, %v868
    %v884 = vand.u32 2147483647, %v868
    %vm885 = vcmp.lt.f32.partialorder %v884, 0.0004427343
    %v886 = vsel %vm885, %v883, %v880
    %v887 = vsub.f32 %v859, %v877
    %v888 = vsub.f32 %v860, %v886
    %889 = vst [vmem:[#allocation11] sm:$0xff] %v887
    %890 = vst [vmem:[#allocation11 + $0x8] sm:$0xff] %v888
    // Predicated region
    $region42: #{tpu_custom_call.1} parent=1 // pred_check
      _
    $region43: #{tpu_custom_call.1} parent=1 // pred_check_branch
      %892 = sbr.rel (0) target = $region45
    $region44: #{tpu_custom_call.1} parent=1 // pred_region
      %894 = vsyncadd [#allocation4], 0
      %s896 = sshll.u32 [#allocation11], 4
      %s897 = int_to_ptr.vmem [resolvable:$true] %s896
      %s898 = sshll.u32 %s5, 4
      %s899 = int_to_ptr.hbm [resolvable:$true] %s898
      %901 = dma.vmem_to_hbm [thread:$0]  %s897, 256, %s899, [#allocation4]
    $region45: #{tpu_custom_call.1} parent=1 // pred_fallthru
      _
    // Predicated region
    $region46: #{tpu_custom_call.1} parent=1 // pred_check
      _
    $region47: #{tpu_custom_call.1} parent=1 // pred_check_branch
      %903 = sbr.rel (0) target = $region49
    $region48: #{tpu_custom_call.1} parent=1 // pred_region
      %905 = dma.done [#allocation4], 256
    $region49: #{tpu_custom_call.1} parent=1 // pred_fallthru
      _
    %906 = vsyncpa [#allocation3], 1
    %907 = vsyncpa [#allocation6], 1
    %908 = vsyncpa [#allocation9], 1
    %909 = vsyncpa [#allocation4], 1

</llo_original>
